<compile_context>
chip_gen: v5e
topology: v5e:2x2
jax: 0.10.0
libtpu: 0.0.40
codegen_flags: <defaults>
</compile_context>

<pallas_src>
import functools
import math

import jax
import jax.numpy as jnp
from jax.experimental import pallas as pl
from jax.experimental.pallas import tpu as pltpu


_VMEM_LIMIT_BYTES = 32 * 1024 * 1024  # explicit: > v5e's 16 MiB default, <= v7x physical


def _pick_tile(dim, cap, align):
    """Largest divisor of `dim` that is <= cap, preferring `align`-aligned ones.

    Never falls back to the full dimension when dim > cap unless no divisor
    exists at all, keeping per-step VMEM bounded and double-buffering alive.
    """
    if dim <= cap:
        return dim
    best_any = 1
    for t in range(min(cap, dim), 0, -1):
        if dim % t == 0:
            if t % align == 0:
                return t
            if best_any == 1:
                best_any = t
    return best_any


# ----------------------------- linear kernel -------------------------------

def _linear_kernel(x_ref, w_ref, b_ref, o_ref, acc_ref):
    """One (bm, bn) output tile, K-blocked: f32 VMEM accumulator, bf16 MXU feeds."""
    k = pl.program_id(2)

    @pl.when(k == 0)
    def _():
        acc_ref[...] = jnp.zeros_like(acc_ref)

    acc_ref[...] += jnp.dot(x_ref[...], w_ref[...],
                            preferred_element_type=jnp.float32)

    @pl.when(k == pl.num_programs(2) - 1)
    def _():
        o_ref[...] = (acc_ref[...] + b_ref[...].astype(jnp.float32)).astype(o_ref.dtype)


def pallas_linear(x, w, b, *, out_dtype=None, bm_max=512, bn_max=512, bk_max=512):
    """y = x @ w + b.  x: (M, K) bf16, w: (K, N) bf16, b: (N,) f32 -> (M, N).

    Grid (M/bm, N/bn, K/bk); K is the innermost ("arbitrary") axis with a VMEM
    f32 accumulator so tiles stay small on v7x/v5e even for large K.
    """
    M, K = x.shape
    K2, N = w.shape
    assert K == K2
    assert x.dtype == w.dtype, "pre-cast activations/weights to the same compute dtype"
    out_dtype = out_dtype or x.dtype

    bm = _pick_tile(M, bm_max, 8)
    bn = _pick_tile(N, bn_max, 128)
    bk = _pick_tile(K, bk_max, 128)
    grid = (M // bm, N // bn, K // bk)
    b2 = b.reshape(1, N)

    cost = pl.CostEstimate(
        flops=2 * M * N * K,
        transcendentals=0,
        bytes_accessed=(M * K + K * N) * x.dtype.itemsize
        + N * b.dtype.itemsize
        + M * N * jnp.dtype(out_dtype).itemsize,
    )
    return pl.pallas_call(
        _linear_kernel,
        out_shape=jax.ShapeDtypeStruct((M, N), out_dtype),
        grid=grid,
        in_specs=[
            pl.BlockSpec((bm, bk), lambda i, j, k: (i, k)),
            pl.BlockSpec((bk, bn), lambda i, j, k: (k, j)),
            pl.BlockSpec((1, bn), lambda i, j, k: (0, j)),
        ],
        out_specs=pl.BlockSpec((bm, bn), lambda i, j, k: (i, j)),
        scratch_shapes=[pltpu.VMEM((bm, bn), jnp.float32)],
        compiler_params=pltpu.CompilerParams(
            dimension_semantics=("parallel", "parallel", "arbitrary"),
            vmem_limit_bytes=_VMEM_LIMIT_BYTES,
        ),
        cost_estimate=cost,
    )(x, w, b2)


# ---------------------------- attention kernel ------------------------------

def _attention_kernel(qkv_ref, o_ref, *, num_heads, head_dim):
    """All heads for one (batch, q-block) grid step.

    qkv_ref: (S, 3*D) resident slab, layout [ q_h0..q_hH | k_h0.. | v_h0.. ].
             The softmax scale is already folded into the q columns (at init).
    o_ref:   (tq, D) output block (merged-heads hidden layout).
    """
    D = num_heads * head_dim
    tq = o_ref.shape[0]
    q0 = pl.multiple_of(pl.program_id(1) * tq, tq)

    # TODO(synk): replace the materialized (tq, S) scores with a KV-blocked
    # online-softmax (flash) loop for large S (v7x VMEM).
    for h in range(num_heads):
        lo = h * head_dim
        # ref-sliced lane sub-ranges: only the needed head columns are loaded.
        q = qkv_ref[pl.ds(q0, tq), lo:lo + head_dim]              # (tq, Dh) bf16
        k = qkv_ref[:, D + lo:D + lo + head_dim]                  # (S,  Dh) bf16
        v = qkv_ref[:, 2 * D + lo:2 * D + lo + head_dim]          # (S,  Dh) bf16

        # scores = (scale*q) @ k^T, f32 accumulation on the MXU.
        # TODO(synk): QuantumMotivicTile source not provided -> plain dot-product.
        scores = jax.lax.dot_general(
            q, k, (((1,), (1,)), ((), ())), preferred_element_type=jnp.float32
        )                                                          # (tq, S)
        scores = scores - jnp.max(scores, axis=-1, keepdims=True)
        p = jnp.exp(scores)
        denom = jnp.sum(p, axis=-1, keepdims=True)
        attn = p * pl.reciprocal(denom, approx=True)               # EUP, off the VALU
        # dropout(p=0.1) is identity in eval mode.
        out_h = jnp.dot(attn.astype(jnp.bfloat16), v,
                        preferred_element_type=jnp.float32)        # (tq, Dh)
        # stream the head result straight into the output block (no concatenate).
        o_ref[:, lo:lo + head_dim] = out_h.astype(o_ref.dtype)


def pallas_attention(qkv, num_heads, head_dim, *, tq_max=256):
    """qkv: (B, S, 3*D) bf16 -> (B, S, D) bf16, grid over (batch, q-blocks)."""
    B, S, threeD = qkv.shape
    D = num_heads * head_dim
    assert threeD == 3 * D
    tq = _pick_tile(S, tq_max, 8)
    nq = S // tq

    kern = functools.partial(_attention_kernel, num_heads=num_heads, head_dim=head_dim)
    itemsize = qkv.dtype.itemsize
    cost = pl.CostEstimate(
        flops=4 * B * num_heads * S * S * head_dim,
        transcendentals=B * num_heads * S * S,
        bytes_accessed=(B * S * threeD + B * S * D) * itemsize,
    )
    return pl.pallas_call(
        kern,
        out_shape=jax.ShapeDtypeStruct((B, S, D), qkv.dtype),
        grid=(B, nq),
        in_specs=[
            # block index constant along the q axis -> slab stays VMEM-resident.
            pl.BlockSpec((pl.Squeezed(), S, threeD), lambda b, qi: (b, 0, 0)),
        ],
        out_specs=pl.BlockSpec((pl.Squeezed(), tq, D), lambda b, qi: (b, qi, 0)),
        compiler_params=pltpu.CompilerParams(
            dimension_semantics=("parallel", "parallel"),
            vmem_limit_bytes=_VMEM_LIMIT_BYTES,
        ),
        cost_estimate=cost,
    )(qkv)


# --------------------------- parameter init --------------------------------

def _linear_init(key, fan_in, fan_out):
    """Deterministic nn.Linear-style init (uniform +- 1/sqrt(fan_in)), f32."""
    bound = 1.0 / math.sqrt(fan_in)
    kw, kb = jax.random.split(key)
    w = jax.random.uniform(kw, (fan_in, fan_out), jnp.float32, -bound, bound)
    b = jax.random.uniform(kb, (fan_out,), jnp.float32, -bound, bound)
    return w, b


def init_qga_params(key, hidden_dim, num_heads):
    k_qkv, k_out = jax.random.split(key)
    w_qkv, b_qkv = _linear_init(k_qkv, hidden_dim, 3 * hidden_dim)   # to_qkv
    w_out, b_out = _linear_init(k_out, hidden_dim, hidden_dim)       # to_out[0]

    # Fold the softmax scale (head_dim**-0.5) into the q columns of to_qkv:
    # softmax((q @ k^T) * s) == softmax((s*q) @ k^T). Free at init, removes all
    # per-step scaling work from the attention kernel.
    head_dim = hidden_dim // num_heads
    scale = head_dim ** (-0.5)
    w_qkv = w_qkv.at[:, :hidden_dim].multiply(scale)
    b_qkv = b_qkv.at[:hidden_dim].multiply(scale)

    # Weights pre-cast to bf16 ONCE (halves weight DMA / VMEM); biases stay f32
    # (tiny, added on the f32 accumulator).
    return {
        "w_qkv": w_qkv.astype(jnp.bfloat16),
        "b_qkv": b_qkv,
        "w_out": w_out.astype(jnp.bfloat16),
        "b_out": b_out,
    }


# ------------------------------ forward ------------------------------------

def quantum_geometric_attention_forward(x, params, num_heads):
    """x: (B, S, D) -> (B, S, D); mirrors QuantumGeometricAttention.forward (eval)."""
    B, S, D = x.shape
    assert D % num_heads == 0
    Dh = D // num_heads

    # single upfront cast; all intermediate activations stay bf16.
    xb = x.astype(jnp.bfloat16)

    # to_qkv (scale folded into the q columns at init), bf16 output slab
    qkv = pallas_linear(xb.reshape(B * S, D), params["w_qkv"], params["b_qkv"],
                        out_dtype=jnp.bfloat16)
    qkv = qkv.reshape(B, S, 3 * D)   # pure view, no transpose / copy

    # TODO(synk): GeometricFlow submodule source was not provided -> identity flow.

    # per-head scores + softmax + attn @ v, fused, grid over (batch, q-blocks)
    out = pallas_attention(qkv, num_heads, Dh)                       # (B, S, D) bf16

    # to_out (dropout identity in eval); final output cast back to the input dtype
    out = pallas_linear(out.reshape(B * S, D), params["w_out"], params["b_out"],
                        out_dtype=x.dtype)
    return out.reshape(B, S, D)


# ------------------------------ driver --------------------------------------

if __name__ == "__main__":
    hidden_dim = 32
    num_heads = 4          # head_dim = 8
    batch, seq = 2, 16

    key = jax.random.PRNGKey(0)
    k_params, k_x = jax.random.split(key)

    params = init_qga_params(k_params, hidden_dim, num_heads)
    x = jax.random.normal(k_x, (batch, seq, hidden_dim), jnp.float32)

    out = quantum_geometric_attention_forward(x, params, num_heads)
    out = jax.block_until_ready(out)

    assert out.shape == (batch, seq, hidden_dim)
    assert out.dtype == jnp.float32
    assert bool(jnp.all(jnp.isfinite(out)))
    print("KERNEL_OK")
</pallas_src>

<mosaic_0001>
module attributes {stable_mosaic.version = 11 : i64} {
  func.func @_linear_kernel(%arg0: i32, %arg1: i32, %arg2: i32, %arg3: memref<32x32xbf16, #tpu.memory_space<vmem>>, %arg4: memref<32x96xbf16, #tpu.memory_space<vmem>>, %arg5: memref<1x96xf32, #tpu.memory_space<vmem>>, %arg6: memref<32x96xbf16, #tpu.memory_space<vmem>>, %arg7: memref<32x96xf32, #tpu.memory_space<vmem>>) attributes {dimension_semantics = [#tpu.dimension_semantics<parallel>, #tpu.dimension_semantics<parallel>, #tpu.dimension_semantics<arbitrary>], iteration_bounds = array<i64: 1, 1, 1>, scalar_prefetch = 0 : i64, scratch_operands = 1 : i64, tpu.core_type = #tpu.core_type<tc>, window_params = [{transform_indices = @transform_0, window_bounds = array<i64: 32, 32>}, {transform_indices = @transform_1, window_bounds = array<i64: 32, 96>}, {transform_indices = @transform_2, window_bounds = array<i64: 1, 96>}, {transform_indices = @transform_3, window_bounds = array<i64: 32, 96>}]} {
    %c0_i32 = arith.constant 0 : i32
    %0 = arith.cmpi eq, %arg2, %c0_i32 : i32
    %1 = arith.extui %0 : i1 to i32
    %c0_i32_0 = arith.constant 0 : i32
    %2 = arith.cmpi ne, %1, %c0_i32_0 : i32
    scf.if %2 {
      %cst_10 = arith.constant 0.000000e+00 : f32
      %12 = vector.broadcast %cst_10 : f32 to vector<32x96xf32>
      %c0_11 = arith.constant 0 : index
      %c0_12 = arith.constant 0 : index
      %13 = vector.load %arg7[%c0_11, %c0_12] : memref<32x96xf32, #tpu.memory_space<vmem>>, vector<32x96xf32>
      tpu.vector_store %arg7[%c0_11, %c0_12], %12 {strides = array<i32>} : memref<32x96xf32, #tpu.memory_space<vmem>>, vector<32x96xf32>,
    } else {
    }
    %c0 = arith.constant 0 : index
    %c0_1 = arith.constant 0 : index
    %3 = vector.load %arg7[%c0, %c0_1] : memref<32x96xf32, #tpu.memory_space<vmem>>, vector<32x96xf32>
    %c0_2 = arith.constant 0 : index
    %c0_3 = arith.constant 0 : index
    %4 = vector.load %arg3[%c0_2, %c0_3] : memref<32x32xbf16, #tpu.memory_space<vmem>>, vector<32x32xbf16>
    %c0_4 = arith.constant 0 : index
    %c0_5 = arith.constant 0 : index
    %5 = vector.load %arg4[%c0_4, %c0_5] : memref<32x96xbf16, #tpu.memory_space<vmem>>, vector<32x96xbf16>
    %cst = arith.constant dense<0.000000e+00> : vector<32x96xf32>
    %6 = tpu.matmul %4, %5, %cst {dimension_numbers = #tpu.dot_dimension_numbers<[1], [0], [0], [1], [0, 0, 1, 1], [], []>} : vector<32x32xbf16>, vector<32x96xbf16>, vector<32x96xf32> -> vector<32x96xf32>
    %7 = arith.addf %3, %6 : vector<32x96xf32>
    %c0_6 = arith.constant 0 : index
    %c0_7 = arith.constant 0 : index
    %8 = vector.load %arg7[%c0_6, %c0_7] : memref<32x96xf32, #tpu.memory_space<vmem>>, vector<32x96xf32>
    tpu.vector_store %arg7[%c0_6, %c0_7], %7 {strides = array<i32>} : memref<32x96xf32, #tpu.memory_space<vmem>>, vector<32x96xf32>,
    %c0_i32_8 = arith.constant 0 : i32
    %9 = arith.cmpi eq, %arg2, %c0_i32_8 : i32
    %10 = arith.extui %9 : i1 to i32
    %c0_i32_9 = arith.constant 0 : i32
    %11 = arith.cmpi ne, %10, %c0_i32_9 : i32
    scf.if %11 {
      %c0_10 = arith.constant 0 : index
      %c0_11 = arith.constant 0 : index
      %12 = vector.load %arg7[%c0_10, %c0_11] : memref<32x96xf32, #tpu.memory_space<vmem>>, vector<32x96xf32>
      %c0_12 = arith.constant 0 : index
      %c0_13 = arith.constant 0 : index
      %13 = vector.load %arg5[%c0_12, %c0_13] : memref<1x96xf32, #tpu.memory_space<vmem>>, vector<1x96xf32>
      %14 = vector.broadcast %13 : vector<1x96xf32> to vector<32x96xf32>
      %15 = arith.addf %12, %14 : vector<32x96xf32>
      %16 = arith.truncf %15 : vector<32x96xf32> to vector<32x96xbf16>
      %c0_14 = arith.constant 0 : index
      %c0_15 = arith.constant 0 : index
      %17 = vector.load %arg6[%c0_14, %c0_15] : memref<32x96xbf16, #tpu.memory_space<vmem>>, vector<32x96xbf16>
      tpu.vector_store %arg6[%c0_14, %c0_15], %16 {strides = array<i32>} : memref<32x96xbf16, #tpu.memory_space<vmem>>, vector<32x96xbf16>,
    } else {
    }
    return
  }
  func.func @transform_0(%arg0: i32, %arg1: i32, %arg2: i32) -> (i32, i32) {
    %c0_i32 = arith.constant 0 : i32
    return %arg0, %arg2 : i32, i32
  }
  func.func @transform_1(%arg0: i32, %arg1: i32, %arg2: i32) -> (i32, i32) {
    %c0_i32 = arith.constant 0 : i32
    return %arg2, %arg1 : i32, i32
  }
  func.func @transform_2(%arg0: i32, %arg1: i32, %arg2: i32) -> (i32, i32) {
    %c0_i32 = arith.constant 0 : i32
    %c0_i32_0 = arith.constant 0 : i32
    return %c0_i32, %arg1 : i32, i32
  }
  func.func @transform_3(%arg0: i32, %arg1: i32, %arg2: i32) -> (i32, i32) {
    %c0_i32 = arith.constant 0 : i32
    return %arg0, %arg1 : i32, i32
  }
}

</mosaic_0001>

<llo_original>
// kernel: tpu_custom_call.1
$region0: #{tpu_custom_call.1}
  #allocation0 [shape = 'u32[]', space=smem, size = 0x4, offset = 0x4, fixed_abs, tag = 'smem constant byte address 0x4 - core index']
  #allocation1 [shape = 'u32[72,128]{1,0:T(1,128)}', space=vmem, size = 0x9000, scoped, tag = 'internal scratch']
  #allocation2 [shape = 'f32[32,96]{1,0:T(8,128)}', space=vmem, size = 0x4000, scoped, tag = 'scratch operand']
  %s0 = inlined_call_operand.hbm [shape: bf16[32,32], index: 0, kind: input, shape index: {}]
  %s1 = inlined_call_operand.hbm [shape: bf16[32,96], index: 1, kind: input, shape index: {}]
  %s2 = inlined_call_operand.vmem [shape: f32[1,96], index: 2, kind: input, shape index: {}]
  %s3 = inlined_call_operand.hbm [shape: bf16[32,96], index: 3, kind: output, shape index: {}]
  %s4 = sld [smem:[#allocation0]]
  $region38: #{tpu_custom_call.1} parent=0
    _
  %s6 = ssub.s32 1, %s4
  %s7 = scalar_select 0, %s6, %s4
  $region1: #{tpu_custom_call.1} parent=0
    #allocation3 [shape = 'u8[8192]{0}', space=vmem, size = 0x2000, scoped, tag = 'input window, operand 0, single buffered']
    #allocation4 [shape = 's32[1]{0}', space=sflag, size = 0x4, scoped, tag = 'scoped memory for tpu_custom_call.1']
    #allocation5 [shape = 's32[1]{0}', space=sflag, size = 0x4, scoped, tag = 'scoped memory for tpu_custom_call.1']
    #allocation6 [shape = 'u8[8192]{0}', space=vmem, size = 0x2000, scoped, tag = 'input window, operand 1, single buffered']
    #allocation7 [shape = 's32[1]{0}', space=sflag, size = 0x4, scoped, tag = 'scoped memory for tpu_custom_call.1']
    #allocation8 [shape = 'u8[8192]{0}', space=vmem, size = 0x2000, scoped, tag = 'output window, operand 0, single buffered']
    %8 = vsyncpa [#allocation4], 0
    %9 = vsyncpa [#allocation7], 0
    %10 = vsyncpa [#allocation5], 0
    // Predicated region
    $region2: #{tpu_custom_call.1} parent=1 // pred_check
      _
    $region3: #{tpu_custom_call.1} parent=1 // pred_check_branch
      %12 = sbr.rel (0) target = $region5
    $region4: #{tpu_custom_call.1} parent=1 // pred_region
      %14 = vsyncadd [#allocation4], 0
      %s15 = sshll.u32 %s0, 4
      %s16 = int_to_ptr.hbm [resolvable:$true] %s15
      %s17 = sshll.u32 [#allocation3], 4
      %s18 = int_to_ptr.vmem [resolvable:$true] %s17
      %23 = dma.hbm_to_vmem [thread:$0]  %s16, 256, %s18, [#allocation4], 64, 64, 4
    $region5: #{tpu_custom_call.1} parent=1 // pred_fallthru
      _
    // Predicated region
    $region6: #{tpu_custom_call.1} parent=1 // pred_check
      _
    $region7: #{tpu_custom_call.1} parent=1 // pred_check_branch
      %25 = sbr.rel (0) target = $region9
    $region8: #{tpu_custom_call.1} parent=1 // pred_region
      %27 = vsyncadd [#allocation7], 0
      %s28 = sshll.u32 %s1, 4
      %s29 = int_to_ptr.hbm [resolvable:$true] %s28
      %s30 = sshll.u32 [#allocation6], 4
      %s31 = int_to_ptr.vmem [resolvable:$true] %s30
      %36 = dma.hbm_to_vmem [thread:$0]  %s29, 256, %s31, [#allocation7], 64, 64, 4
    $region9: #{tpu_custom_call.1} parent=1 // pred_fallthru
      _
    // Predicated region
    $region10: #{tpu_custom_call.1} parent=1 // pred_check
      _
    $region11: #{tpu_custom_call.1} parent=1 // pred_check_branch
      %38 = sbr.rel (0) target = $region13
    $region12: #{tpu_custom_call.1} parent=1 // pred_region
      _
    $region13: #{tpu_custom_call.1} parent=1 // pred_fallthru
      _
    // Predicated region
    $region14: #{tpu_custom_call.1} parent=1 // pred_check
      _
    $region15: #{tpu_custom_call.1} parent=1 // pred_check_branch
      %40 = sbr.rel (0) target = $region17
    $region16: #{tpu_custom_call.1} parent=1 // pred_region
      %42 = dma.done [#allocation4], 256
    $region17: #{tpu_custom_call.1} parent=1 // pred_fallthru
      _
    // Predicated region
    $region18: #{tpu_custom_call.1} parent=1 // pred_check
      _
    $region19: #{tpu_custom_call.1} parent=1 // pred_check_branch
      %44 = sbr.rel (0) target = $region21
    $region20: #{tpu_custom_call.1} parent=1 // pred_region
      %46 = dma.done [#allocation7], 256
    $region21: #{tpu_custom_call.1} parent=1 // pred_fallthru
      _
    %p48 = scmp.eq.s32.totalorder 0, 0
    // Predicated region
    $region22: #{tpu_custom_call.1} parent=1 // pred_check
      %p49 = pneg %p48
    $region23: #{tpu_custom_call.1} parent=1 // pred_check_branch
      %51 = sbr.rel (%p49) target = $region25
    $region24: #{tpu_custom_call.1} parent=1 // pred_region
      %vm52 = vcmask 785408
      %53 = vst.msk [vmem:[#allocation2] sm:$0xff] %vm52, 0.0
      %54 = vst.msk [vmem:[#allocation2 + $0x8] sm:$0xff] %vm52, 0.0
      %55 = vst.msk [vmem:[#allocation2 + $0x10] sm:$0xff] %vm52, 0.0
      %56 = vst.msk [vmem:[#allocation2 + $0x18] sm:$0xff] %vm52, 0.0
    $region25: #{tpu_custom_call.1} parent=1 // pred_fallthru
      _
    %v57 = vld [vmem:[#allocation2] sm:$0xff]
    %v58 = vld [vmem:[#allocation2 + $0x8] sm:$0xff]
    %v59 = vld [vmem:[#allocation2 + $0x10] sm:$0xff]
    %v60 = vld [vmem:[#allocation2 + $0x18] sm:$0xff]
    %v61 = vld [vmem:[#allocation3] sm:$0xf]
    %v62 = vld [vmem:[#allocation3 + $0x4] sm:$0xf]
    %v63 = vld [vmem:[#allocation3 + $0x8] sm:$0xf]
    %v64 = vld [vmem:[#allocation3 + $0xc] sm:$0xf]
    %v65 = vld [vmem:[#allocation6] sm:$0xf]
    %v66 = vld [vmem:[#allocation6 + $0x4] sm:$0xf]
    %v67 = vld [vmem:[#allocation6 + $0x8] sm:$0xf]
    %v68 = vld [vmem:[#allocation6 + $0xc] sm:$0xf]
    %v73 = vunpack.c.l.b16 %v61
    %v74 = vunpack.c.l.b16 %v62
    %v75 = vunpack.c.l.b16 %v63
    %v76 = vunpack.c.l.b16 %v64
    %v77 = vpack.c.b16 %v74, %v73
    %v78 = vpack.c.b16 %v76, %v75
    %v83 = vunpack.c.l.b16 %v65
    %v84 = vunpack.c.l.b16 %v66
    %v85 = vunpack.c.l.b16 %v67
    %v86 = vunpack.c.l.b16 %v68
    %v87 = vpack.c.b16 %v84, %v83
    %v88 = vpack.c.b16 %v86, %v85
    %vm91 = vcmask 261120
    %v93 = vsel %vm91, %v77, 0
    %v96 = vsel %vm91, %v78, 0
    %98 = vmatpush.bf16.msra.mxu0 0
    %99 = vmatpush.bf16.msra.mxu0 0
    %100 = vmatpush.bf16.msra.mxu0 0
    %101 = vmatpush.bf16.msra.mxu0 0
    %102 = vmatpush.bf16.msra.mxu0 0
    %103 = vmatpush.bf16.msra.mxu0 0
    %104 = vmatpush.bf16.msra.mxu0 %v88
    %105 = vmatpush.bf16.msra.mxu0 %v87
    %106 = vmatmul.bf16.gmra.mxu0 %v93
    %v107 = vpop.f32.mrf.mxu0
    %v108 = vadd.f32 0.0, %v107
    %v109 = vpop.f32.mrf.mxu0
    %v110 = vadd.f32 0.0, %v109
    %111 = vmatmul.bf16.gmra.mxu0 %v96
    %v112 = vpop.f32.mrf.mxu0
    %v113 = vadd.f32 0.0, %v112
    %v114 = vpop.f32.mrf.mxu0
    %v115 = vadd.f32 0.0, %v114
    %116 = vdwg.mxu0
    %v117 = vadd.f32 %v57, %v108
    %v118 = vadd.f32 %v58, %v110
    %v119 = vadd.f32 %v59, %v113
    %v120 = vadd.f32 %v60, %v115
    %vm121 = vcmask 785408
    %122 = vst.msk [vmem:[#allocation2] sm:$0xff] %vm121, %v117
    %123 = vst.msk [vmem:[#allocation2 + $0x8] sm:$0xff] %vm121, %v118
    %124 = vst.msk [vmem:[#allocation2 + $0x10] sm:$0xff] %vm121, %v119
    %125 = vst.msk [vmem:[#allocation2 + $0x18] sm:$0xff] %vm121, %v120
    // Predicated region
    $region26: #{tpu_custom_call.1} parent=1 // pred_check
      %p126 = pneg %p48
    $region27: #{tpu_custom_call.1} parent=1 // pred_check_branch
      %128 = sbr.rel (%p126) target = $region29
    $region28: #{tpu_custom_call.1} parent=1 // pred_region
      %v129 = vld [vmem:[#allocation2] sm:$0xff]
      %v130 = vld [vmem:[#allocation2 + $0x8] sm:$0xff]
      %v131 = vld [vmem:[#allocation2 + $0x10] sm:$0xff]
      %v132 = vld [vmem:[#allocation2 + $0x18] sm:$0xff]
      %v133 = vld [vmem:[%s2] sm:$0x1]
      %v135 = vperm.slane %v133, 0
      %v137 = vadd.f32 %v129, %v135
      %v138 = vadd.f32 %v130, %v135
      %v139 = vadd.f32 %v131, %v135
      %v140 = vadd.f32 %v132, %v135
      %v141 = vpack.c.bf16 %v137, %v137
      %v142 = vpack.c.bf16 %v138, %v138
      %v143 = vpack.c.bf16 %v139, %v139
      %v144 = vpack.c.bf16 %v140, %v140
      %vm145 = vcmask 781312
      %146 = vst.msk [vmem:[#allocation8] sm:$0xf] %vm145, %v141
      %147 = vst.msk [vmem:[#allocation8 + $0x4] sm:$0xf] %vm145, %v142
      %148 = vst.msk [vmem:[#allocation8 + $0x8] sm:$0xf] %vm145, %v143
      %149 = vst.msk [vmem:[#allocation8 + $0xc] sm:$0xf] %vm145, %v144
    $region29: #{tpu_custom_call.1} parent=1 // pred_fallthru
      _
    // Predicated region
    $region30: #{tpu_custom_call.1} parent=1 // pred_check
      _
    $region31: #{tpu_custom_call.1} parent=1 // pred_check_branch
      %151 = sbr.rel (0) target = $region33
    $region32: #{tpu_custom_call.1} parent=1 // pred_region
      %153 = vsyncadd [#allocation5], 0
      %s154 = sshll.u32 [#allocation8], 4
      %s155 = int_to_ptr.vmem [resolvable:$true] %s154
      %s156 = sshll.u32 %s3, 4
      %s157 = int_to_ptr.hbm [resolvable:$true] %s156
      %162 = dma.vmem_to_hbm [thread:$0]  %s155, 256, %s157, [#allocation5], 64, 64, 4
    $region33: #{tpu_custom_call.1} parent=1 // pred_fallthru
      _
    // Predicated region
    $region34: #{tpu_custom_call.1} parent=1 // pred_check
      _
    $region35: #{tpu_custom_call.1} parent=1 // pred_check_branch
      %164 = sbr.rel (0) target = $region37
    $region36: #{tpu_custom_call.1} parent=1 // pred_region
      %166 = dma.done [#allocation5], 256
    $region37: #{tpu_custom_call.1} parent=1 // pred_fallthru
      _
    %167 = vsyncpa [#allocation4], 1
    %168 = vsyncpa [#allocation7], 1
    %169 = vsyncpa [#allocation5], 1

</llo_original>
